<compile_context>
chip_gen: v7x
topology: tpu7x:2x2x1
jax: 0.10.0
libtpu: 0.0.40
codegen_flags: <defaults>
</compile_context>

<pallas_src>
import jax
import jax.numpy as jnp
from jax.experimental import pallas as pl
from jax.experimental.pallas import tpu as pltpu


def _round_up(n, m):
    return ((n + m - 1) // m) * m


def _autoencoder_kernel(x_ref,
                        w1_ref, b1_ref,
                        w23_ref, b23_ref,
                        w4_ref, b4_ref,
                        o_ref):
    # bf16 MXU operands, f32 accumulation (preferred_element_type).
    x = x_ref[...].astype(jnp.bfloat16)

    # encoder stage 1: Linear(26, 18) + ReLU
    h = jnp.dot(x, w1_ref[...], preferred_element_type=jnp.float32) + b1_ref[...]
    h = jnp.maximum(h, 0.0)

    # fused Linear(18, 9) -> Linear(9, 18) (no ReLU in between), then ReLU
    d = jnp.dot(h.astype(jnp.bfloat16), w23_ref[...],
                preferred_element_type=jnp.float32) + b23_ref[...]
    d = jnp.maximum(d, 0.0)

    # decoder stage 2: Linear(18, 26)
    y = jnp.dot(d.astype(jnp.bfloat16), w4_ref[...],
                preferred_element_type=jnp.float32) + b4_ref[...]

    o_ref[...] = y.astype(o_ref.dtype)


def _tile_and_vmem_defaults():
    """Per-generation defaults: v5e/v6e have 128 MiB physical VMEM, v7x only 64 MiB."""
    try:
        kind = jax.devices()[0].device_kind.lower()
    except Exception:
        kind = ""
    if ("v5" in kind) or ("v6" in kind):
        return 16384, 96 * 1024 * 1024   # large tiles fit comfortably in 128 MiB
    # Safe everywhere (well under v7x's 64 MiB VMEM incl. double buffering).
    return 8192, 48 * 1024 * 1024


def autoencoder_statistic(x, params, *, tile_b=None, vmem_limit_bytes=None):
    """x: (B, 26) float32. params: dict of weights (in,out) f32 and biases (out,) f32."""
    B, F = x.shape
    assert F == 26

    default_tile, default_vmem = _tile_and_vmem_defaults()
    if tile_b is None:
        tile_b = default_tile
    if vmem_limit_bytes is None:
        vmem_limit_bytes = default_vmem

    bf = jnp.bfloat16
    w1 = params["w1"].astype(bf)
    b1 = params["b1"].reshape(1, -1).astype(jnp.float32)
    w4 = params["w4"].astype(bf)
    b4 = params["b4"].reshape(1, -1).astype(jnp.float32)

    # Algebraic fusion of the two middle linears (done once, in f32, in the wrapper).
    w23 = (params["w2"] @ params["w3"]).astype(bf)                                  # (18, 18)
    b23 = (params["b2"] @ params["w3"] + params["b3"]).reshape(1, -1).astype(jnp.float32)

    # Batch tile: multiple of 8 (sublane), capped by the batch, and split so the
    # grid has >= 2 steps whenever possible (keeps both v7x TensorCores busy).
    tile_b = _round_up(max(8, tile_b), 8)
    b8 = _round_up(B, 8)
    tile_b = min(tile_b, b8)
    if b8 >= 16:
        tile_b = min(tile_b, _round_up(pl.cdiv(b8, 2), 8))

    # No padding of x and no trailing slice: Pallas masks the partial last block.
    grid = (pl.cdiv(B, tile_b),)

    x_spec = pl.BlockSpec((tile_b, 26), lambda i: (i, 0))
    out_spec = pl.BlockSpec((tile_b, 26), lambda i: (i, 0))

    def resident(arr):
        # Full-shape block with a constant index_map: stays VMEM-resident across
        # the whole batch grid (never re-fetched).
        return pl.BlockSpec(arr.shape, lambda i: (0, 0))

    return pl.pallas_call(
        _autoencoder_kernel,
        out_shape=jax.ShapeDtypeStruct((B, 26), x.dtype),
        grid=grid,
        in_specs=[x_spec,
                  resident(w1), resident(b1),
                  resident(w23), resident(b23),
                  resident(w4), resident(b4)],
        out_specs=out_spec,
        compiler_params=pltpu.CompilerParams(
            dimension_semantics=("parallel",),      # megacore sharding on v7x
            vmem_limit_bytes=vmem_limit_bytes),
    )(x, w1, b1, w23, b23, w4, b4)


def init_params(key):
    """Deterministic init mirroring nn.Linear shapes.
    PyTorch stores W as (out, in); we store the transpose (in, out)."""
    ks = jax.random.split(key, 8)

    def linear(kw, kb, fan_in, fan_out):
        bound = 1.0 / jnp.sqrt(fan_in)
        w = jax.random.uniform(kw, (fan_in, fan_out), jnp.float32, -bound, bound)
        b = jax.random.uniform(kb, (fan_out,), jnp.float32, -bound, bound)
        return w, b

    w1, b1 = linear(ks[0], ks[1], 26, 18)
    w2, b2 = linear(ks[2], ks[3], 18, 9)
    w3, b3 = linear(ks[4], ks[5], 9, 18)
    w4, b4 = linear(ks[6], ks[7], 18, 26)
    return dict(w1=w1, b1=b1, w2=w2, b2=b2, w3=w3, b3=b3, w4=w4, b4=b4)


def _reference_f32(x, p):
    # Unfused 4-matmul reference matching the PyTorch module layer-by-layer.
    h = jnp.maximum(x @ p["w1"] + p["b1"], 0.0)
    z = h @ p["w2"] + p["b2"]
    d = jnp.maximum(z @ p["w3"] + p["b3"], 0.0)
    return d @ p["w4"] + p["b4"]


def _reference_bf16(x, p):
    # Mirrors the kernel arithmetic (fused middle linears, bf16 MXU operands,
    # f32 accumulation) -> tight correctness check.
    bf, f32 = jnp.bfloat16, jnp.float32
    w23 = (p["w2"] @ p["w3"]).astype(bf)
    b23 = p["b2"] @ p["w3"] + p["b3"]
    h = jnp.maximum(
        jnp.dot(x.astype(bf), p["w1"].astype(bf), preferred_element_type=f32) + p["b1"], 0.0)
    d = jnp.maximum(
        jnp.dot(h.astype(bf), w23, preferred_element_type=f32) + b23, 0.0)
    return jnp.dot(d.astype(bf), p["w4"].astype(bf), preferred_element_type=f32) + p["b4"]


if __name__ == "__main__":
    key = jax.random.PRNGKey(0)
    k_x, k_p = jax.random.split(key)
    params = init_params(k_p)

    # Small batches that exercise partial last blocks (B not a multiple of 8 or of
    # tile_b) and a >=2-step grid, without any pad/slice in the wrapper.
    for B in (12, 37):
        kx = jax.random.fold_in(k_x, B)
        x = jax.random.normal(kx, (B, 26), jnp.float32)

        out = jax.block_until_ready(autoencoder_statistic(x, params))
        assert out.shape == (B, 26)

        # Tight check vs. a reference with matching (bf16-operand, f32-accum) math.
        ref_bf = _reference_bf16(x, params)
        assert jnp.allclose(out, ref_bf, atol=2e-3, rtol=2e-3)

        # Loose check vs. the exact-f32 PyTorch-equivalent forward (bf16 MXU
        # operands introduce ~1e-3-scale differences; accumulation stays f32).
        ref = _reference_f32(x, params)
        assert jnp.allclose(out, ref, atol=3e-2, rtol=3e-2)

    print("KERNEL_OK")
</pallas_src>

<mosaic_0001>
module attributes {stable_mosaic.version = 11 : i64} {
  func.func @_autoencoder_kernel(%arg0: i32, %arg1: memref<8x26xf32, #tpu.memory_space<vmem>>, %arg2: memref<26x18xbf16, #tpu.memory_space<vmem>>, %arg3: memref<1x18xf32, #tpu.memory_space<vmem>>, %arg4: memref<18x18xbf16, #tpu.memory_space<vmem>>, %arg5: memref<1x18xf32, #tpu.memory_space<vmem>>, %arg6: memref<18x26xbf16, #tpu.memory_space<vmem>>, %arg7: memref<1x26xf32, #tpu.memory_space<vmem>>, %arg8: memref<8x26xf32, #tpu.memory_space<vmem>>) attributes {dimension_semantics = [#tpu.dimension_semantics<parallel>], iteration_bounds = array<i64: 2>, scalar_prefetch = 0 : i64, scratch_operands = 0 : i64, tpu.core_type = #tpu.core_type<tc>, window_params = [{transform_indices = @transform_0, window_bounds = array<i64: 8, 26>}, {pipeline_mode = #tpu.pipeline_mode<synchronous>, transform_indices = @transform_1, window_bounds = array<i64: 26, 18>}, {pipeline_mode = #tpu.pipeline_mode<synchronous>, transform_indices = @transform_2, window_bounds = array<i64: 1, 18>}, {pipeline_mode = #tpu.pipeline_mode<synchronous>, transform_indices = @transform_3, window_bounds = array<i64: 18, 18>}, {pipeline_mode = #tpu.pipeline_mode<synchronous>, transform_indices = @transform_4, window_bounds = array<i64: 1, 18>}, {pipeline_mode = #tpu.pipeline_mode<synchronous>, transform_indices = @transform_5, window_bounds = array<i64: 18, 26>}, {pipeline_mode = #tpu.pipeline_mode<synchronous>, transform_indices = @transform_6, window_bounds = array<i64: 1, 26>}, {transform_indices = @transform_7, window_bounds = array<i64: 8, 26>}]} {
    %c0 = arith.constant 0 : index
    %c0_0 = arith.constant 0 : index
    %0 = vector.load %arg1[%c0, %c0_0] : memref<8x26xf32, #tpu.memory_space<vmem>>, vector<8x26xf32>
    %1 = arith.truncf %0 : vector<8x26xf32> to vector<8x26xbf16>
    %c0_1 = arith.constant 0 : index
    %c0_2 = arith.constant 0 : index
    %2 = vector.load %arg2[%c0_1, %c0_2] : memref<26x18xbf16, #tpu.memory_space<vmem>>, vector<26x18xbf16>
    %cst = arith.constant dense<0.000000e+00> : vector<8x18xf32>
    %3 = tpu.matmul %1, %2, %cst {dimension_numbers = #tpu.dot_dimension_numbers<[1], [0], [0], [1], [0, 0, 1, 1], [], []>} : vector<8x26xbf16>, vector<26x18xbf16>, vector<8x18xf32> -> vector<8x18xf32>
    %c0_3 = arith.constant 0 : index
    %c0_4 = arith.constant 0 : index
    %4 = vector.load %arg3[%c0_3, %c0_4] : memref<1x18xf32, #tpu.memory_space<vmem>>, vector<1x18xf32>
    %5 = vector.broadcast %4 : vector<1x18xf32> to vector<8x18xf32>
    %6 = arith.addf %3, %5 : vector<8x18xf32>
    %cst_5 = arith.constant 0.000000e+00 : f32
    %7 = vector.broadcast %cst_5 : f32 to vector<8x18xf32>
    %8 = arith.maximumf %6, %7 : vector<8x18xf32>
    %9 = arith.truncf %8 : vector<8x18xf32> to vector<8x18xbf16>
    %c0_6 = arith.constant 0 : index
    %c0_7 = arith.constant 0 : index
    %10 = vector.load %arg4[%c0_6, %c0_7] : memref<18x18xbf16, #tpu.memory_space<vmem>>, vector<18x18xbf16>
    %cst_8 = arith.constant dense<0.000000e+00> : vector<8x18xf32>
    %11 = tpu.matmul %9, %10, %cst_8 {dimension_numbers = #tpu.dot_dimension_numbers<[1], [0], [0], [1], [0, 0, 1, 1], [], []>} : vector<8x18xbf16>, vector<18x18xbf16>, vector<8x18xf32> -> vector<8x18xf32>
    %c0_9 = arith.constant 0 : index
    %c0_10 = arith.constant 0 : index
    %12 = vector.load %arg5[%c0_9, %c0_10] : memref<1x18xf32, #tpu.memory_space<vmem>>, vector<1x18xf32>
    %13 = vector.broadcast %12 : vector<1x18xf32> to vector<8x18xf32>
    %14 = arith.addf %11, %13 : vector<8x18xf32>
    %cst_11 = arith.constant 0.000000e+00 : f32
    %15 = vector.broadcast %cst_11 : f32 to vector<8x18xf32>
    %16 = arith.maximumf %14, %15 : vector<8x18xf32>
    %17 = arith.truncf %16 : vector<8x18xf32> to vector<8x18xbf16>
    %c0_12 = arith.constant 0 : index
    %c0_13 = arith.constant 0 : index
    %18 = vector.load %arg6[%c0_12, %c0_13] : memref<18x26xbf16, #tpu.memory_space<vmem>>, vector<18x26xbf16>
    %cst_14 = arith.constant dense<0.000000e+00> : vector<8x26xf32>
    %19 = tpu.matmul %17, %18, %cst_14 {dimension_numbers = #tpu.dot_dimension_numbers<[1], [0], [0], [1], [0, 0, 1, 1], [], []>} : vector<8x18xbf16>, vector<18x26xbf16>, vector<8x26xf32> -> vector<8x26xf32>
    %c0_15 = arith.constant 0 : index
    %c0_16 = arith.constant 0 : index
    %20 = vector.load %arg7[%c0_15, %c0_16] : memref<1x26xf32, #tpu.memory_space<vmem>>, vector<1x26xf32>
    %21 = vector.broadcast %20 : vector<1x26xf32> to vector<8x26xf32>
    %22 = arith.addf %19, %21 : vector<8x26xf32>
    %c0_17 = arith.constant 0 : index
    %c0_18 = arith.constant 0 : index
    %23 = vector.load %arg8[%c0_17, %c0_18] : memref<8x26xf32, #tpu.memory_space<vmem>>, vector<8x26xf32>
    tpu.vector_store %arg8[%c0_17, %c0_18], %22 {strides = array<i32>} : memref<8x26xf32, #tpu.memory_space<vmem>>, vector<8x26xf32>,
    return
  }
  func.func @transform_0(%arg0: i32) -> (i32, i32) {
    %c0_i32 = arith.constant 0 : i32
    %c0_i32_0 = arith.constant 0 : i32
    return %arg0, %c0_i32 : i32, i32
  }
  func.func @transform_1(%arg0: i32) -> (i32, i32) {
    %c0_i32 = arith.constant 0 : i32
    %c0_i32_0 = arith.constant 0 : i32
    %c0_i32_1 = arith.constant 0 : i32
    return %c0_i32, %c0_i32_0 : i32, i32
  }
  func.func @transform_2(%arg0: i32) -> (i32, i32) {
    %c0_i32 = arith.constant 0 : i32
    %c0_i32_0 = arith.constant 0 : i32
    %c0_i32_1 = arith.constant 0 : i32
    return %c0_i32, %c0_i32_0 : i32, i32
  }
  func.func @transform_3(%arg0: i32) -> (i32, i32) {
    %c0_i32 = arith.constant 0 : i32
    %c0_i32_0 = arith.constant 0 : i32
    %c0_i32_1 = arith.constant 0 : i32
    return %c0_i32, %c0_i32_0 : i32, i32
  }
  func.func @transform_4(%arg0: i32) -> (i32, i32) {
    %c0_i32 = arith.constant 0 : i32
    %c0_i32_0 = arith.constant 0 : i32
    %c0_i32_1 = arith.constant 0 : i32
    return %c0_i32, %c0_i32_0 : i32, i32
  }
  func.func @transform_5(%arg0: i32) -> (i32, i32) {
    %c0_i32 = arith.constant 0 : i32
    %c0_i32_0 = arith.constant 0 : i32
    %c0_i32_1 = arith.constant 0 : i32
    return %c0_i32, %c0_i32_0 : i32, i32
  }
  func.func @transform_6(%arg0: i32) -> (i32, i32) {
    %c0_i32 = arith.constant 0 : i32
    %c0_i32_0 = arith.constant 0 : i32
    %c0_i32_1 = arith.constant 0 : i32
    return %c0_i32, %c0_i32_0 : i32, i32
  }
  func.func @transform_7(%arg0: i32) -> (i32, i32) {
    %c0_i32 = arith.constant 0 : i32
    %c0_i32_0 = arith.constant 0 : i32
    return %arg0, %c0_i32 : i32, i32
  }
}

</mosaic_0001>

<llo_original>
// kernel: tpu_custom_call.1
$region0: #{tpu_custom_call.1}
  #allocation0 [shape = 'u32[]', space=smem, size = 0x4, offset = 0x4, fixed_abs, tag = 'smem constant byte address 0x4 - core index']
  #allocation1 [shape = 'u32[144,128]{1,0:T(1,128)}', space=vmem, size = 0x12000, scoped, tag = 'internal scratch']
  %s0 = inlined_call_operand.vmem [shape: f32[12,26], index: 0, kind: input, shape index: {}]
  %s1 = inlined_call_operand.vmem [shape: bf16[26,18], index: 1, kind: input, shape index: {}]
  %s2 = inlined_call_operand.vmem [shape: f32[1,18], index: 2, kind: input, shape index: {}]
  %s3 = inlined_call_operand.vmem [shape: bf16[18,18], index: 3, kind: input, shape index: {}]
  %s4 = inlined_call_operand.vmem [shape: f32[1,18], index: 4, kind: input, shape index: {}]
  %s5 = inlined_call_operand.vmem [shape: bf16[18,26], index: 5, kind: input, shape index: {}]
  %s6 = inlined_call_operand.vmem [shape: f32[1,26], index: 6, kind: input, shape index: {}]
  %s7 = inlined_call_operand.hbm [shape: f32[12,26], index: 7, kind: output, shape index: {}]
  %s8 = sld [smem:[#allocation0]]
  $region61: #{tpu_custom_call.1} parent=0
    _
  %s10 = ssub.s32 1, %s8
  %s11 = scalar_select 0, %s10, %s8
  $region1: #{tpu_custom_call.1} parent=0
    #allocation2 [shape = 'u8[8192]{0}', space=vmem, size = 0x2000, scoped, tag = 'output window, operand 0']
    #allocation3 [shape = 's32[2]{0}', space=sflag, size = 0x8, scoped, tag = 'scoped memory for tpu_custom_call.1']
    %12 = vsyncpa [#allocation3], 0
    %s13 = scalar_lea.sflag [#allocation3], 1
    %14 = vsyncpa %s13, 0
    loop: start=0, step=1, limit=4
    $region2: #{tpu_custom_call.1} parent=1 // loop_pre_header
      _
    $region3: #{tpu_custom_call.1} parent=1 // loop_header
      %s16 = sphi 0, %s20
      %p17 = scmp.ge.s32.totalorder %s16, 4
      %s26 = sphi 0, %s28
      %s29 = sphi 0, %s26
      %s30 = sphi 0, %s29
      %s46 = sphi 0, %s30
      %s50 = sphi 0, %s50
      %s52 = sphi 0, %s50
      %s53 = sphi 0, %s52
      %s67 = sphi 0, %s53
      %s71 = sphi 0, %s71
      %s73 = sphi 0, %s71
      %s74 = sphi 0, %s73
      %s88 = sphi 0, %s74
      %s92 = sphi 0, %s92
      %s94 = sphi 0, %s92
      %s95 = sphi 0, %s94
      %s109 = sphi 0, %s95
      %s113 = sphi 0, %s113
      %s115 = sphi 0, %s113
      %s116 = sphi 0, %s115
      %s130 = sphi 0, %s116
      %s134 = sphi 0, %s134
      %s136 = sphi 0, %s134
      %s137 = sphi 0, %s136
      %s151 = sphi 0, %s137
      %s155 = sphi 0, %s155
      %s157 = sphi 0, %s155
      %s158 = sphi 0, %s157
      %s172 = sphi 0, %s158
      %s178 = sphi 0, %s180
      %s181 = sphi 0, %s178
      %s182 = sphi 0, %s181
      %s198 = sphi 0, %s182
    $region4: #{tpu_custom_call.1} parent=1 // loop_header_branch
      %19 = sbr.rel (%p17) target = $region8
    $region5: #{tpu_custom_call.1} parent=1 // loop_body
      %s21 = ssub.s32 %s16, 1
      %s22 = ssub.s32 %s16, 2
      %s23 = sadd.s32 %s16, 1
      %s24 = ssub.s32 %s16, %s23
      %p25 = scmp.eq.s32.totalorder %s24, 0
      %s27 = sadd.s32 %s26, 1
      %s28 = scalar_select %p25, %s26, %s27
      %p31 = pneg %p25
      %p32 = scmp.eq.s32.totalorder %s16, 1
      %p33 = por %p31, %p32
      %p34 = scmp.ne.s32.totalorder %s26, %s29
      %p35 = scmp.eq.s32.totalorder %s16, 0
      %p36 = por %p34, %p35
      %p37 = scmp.ne.s32.totalorder %s26, %s29
      %p38 = scmp.eq.s32.totalorder %s21, 1
      %p39 = por %p37, %p38
      %p40 = scmp.ne.s32.totalorder %s29, %s30
      %p41 = scmp.eq.s32.totalorder %s21, 0
      %p42 = por %p40, %p41
      %p43 = scmp.ne.s32.totalorder %s29, %s30
      %p44 = scmp.eq.s32.totalorder %s22, 1
      %p45 = por %p43, %p44
      %p47 = scmp.ne.s32.totalorder %s30, %s46
      %p48 = scmp.eq.s32.totalorder %s22, 0
      %p49 = por %p47, %p48
      %s51 = sadd.s32 %s50, 1
      %p54 = scmp.eq.s32.totalorder %s16, 1
      %p55 = scmp.ne.s32.totalorder %s50, %s52
      %p56 = scmp.eq.s32.totalorder %s16, 0
      %p57 = por %p55, %p56
      %p58 = scmp.ne.s32.totalorder %s50, %s52
      %p59 = scmp.eq.s32.totalorder %s21, 1
      %p60 = por %p58, %p59
      %p61 = scmp.ne.s32.totalorder %s52, %s53
      %p62 = scmp.eq.s32.totalorder %s21, 0
      %p63 = por %p61, %p62
      %p64 = scmp.ne.s32.totalorder %s52, %s53
      %p65 = scmp.eq.s32.totalorder %s22, 1
      %p66 = por %p64, %p65
      %p68 = scmp.ne.s32.totalorder %s53, %s67
      %p69 = scmp.eq.s32.totalorder %s22, 0
      %p70 = por %p68, %p69
      %s72 = sadd.s32 %s71, 1
      %p75 = scmp.eq.s32.totalorder %s16, 1
      %p76 = scmp.ne.s32.totalorder %s71, %s73
      %p77 = scmp.eq.s32.totalorder %s16, 0
      %p78 = por %p76, %p77
      %p79 = scmp.ne.s32.totalorder %s71, %s73
      %p80 = scmp.eq.s32.totalorder %s21, 1
      %p81 = por %p79, %p80
      %p82 = scmp.ne.s32.totalorder %s73, %s74
      %p83 = scmp.eq.s32.totalorder %s21, 0
      %p84 = por %p82, %p83
      %p85 = scmp.ne.s32.totalorder %s73, %s74
      %p86 = scmp.eq.s32.totalorder %s22, 1
      %p87 = por %p85, %p86
      %p89 = scmp.ne.s32.totalorder %s74, %s88
      %p90 = scmp.eq.s32.totalorder %s22, 0
      %p91 = por %p89, %p90
      %s93 = sadd.s32 %s92, 1
      %p96 = scmp.eq.s32.totalorder %s16, 1
      %p97 = scmp.ne.s32.totalorder %s92, %s94
      %p98 = scmp.eq.s32.totalorder %s16, 0
      %p99 = por %p97, %p98
      %p100 = scmp.ne.s32.totalorder %s92, %s94
      %p101 = scmp.eq.s32.totalorder %s21, 1
      %p102 = por %p100, %p101
      %p103 = scmp.ne.s32.totalorder %s94, %s95
      %p104 = scmp.eq.s32.totalorder %s21, 0
      %p105 = por %p103, %p104
      %p106 = scmp.ne.s32.totalorder %s94, %s95
      %p107 = scmp.eq.s32.totalorder %s22, 1
      %p108 = por %p106, %p107
      %p110 = scmp.ne.s32.totalorder %s95, %s109
      %p111 = scmp.eq.s32.totalorder %s22, 0
      %p112 = por %p110, %p111
      %s114 = sadd.s32 %s113, 1
      %p117 = scmp.eq.s32.totalorder %s16, 1
      %p118 = scmp.ne.s32.totalorder %s113, %s115
      %p119 = scmp.eq.s32.totalorder %s16, 0
      %p120 = por %p118, %p119
      %p121 = scmp.ne.s32.totalorder %s113, %s115
      %p122 = scmp.eq.s32.totalorder %s21, 1
      %p123 = por %p121, %p122
      %p124 = scmp.ne.s32.totalorder %s115, %s116
      %p125 = scmp.eq.s32.totalorder %s21, 0
      %p126 = por %p124, %p125
      %p127 = scmp.ne.s32.totalorder %s115, %s116
      %p128 = scmp.eq.s32.totalorder %s22, 1
      %p129 = por %p127, %p128
      %p131 = scmp.ne.s32.totalorder %s116, %s130
      %p132 = scmp.eq.s32.totalorder %s22, 0
      %p133 = por %p131, %p132
      %s135 = sadd.s32 %s134, 1
      %p138 = scmp.eq.s32.totalorder %s16, 1
      %p139 = scmp.ne.s32.totalorder %s134, %s136
      %p140 = scmp.eq.s32.totalorder %s16, 0
      %p141 = por %p139, %p140
      %p142 = scmp.ne.s32.totalorder %s134, %s136
      %p143 = scmp.eq.s32.totalorder %s21, 1
      %p144 = por %p142, %p143
      %p145 = scmp.ne.s32.totalorder %s136, %s137
      %p146 = scmp.eq.s32.totalorder %s21, 0
      %p147 = por %p145, %p146
      %p148 = scmp.ne.s32.totalorder %s136, %s137
      %p149 = scmp.eq.s32.totalorder %s22, 1
      %p150 = por %p148, %p149
      %p152 = scmp.ne.s32.totalorder %s137, %s151
      %p153 = scmp.eq.s32.totalorder %s22, 0
      %p154 = por %p152, %p153
      %s156 = sadd.s32 %s155, 1
      %p159 = scmp.eq.s32.totalorder %s16, 1
      %p160 = scmp.ne.s32.totalorder %s155, %s157
      %p161 = scmp.eq.s32.totalorder %s16, 0
      %p162 = por %p160, %p161
      %p163 = scmp.ne.s32.totalorder %s155, %s157
      %p164 = scmp.eq.s32.totalorder %s21, 1
      %p165 = por %p163, %p164
      %p166 = scmp.ne.s32.totalorder %s157, %s158
      %p167 = scmp.eq.s32.totalorder %s21, 0
      %p168 = por %p166, %p167
      %p169 = scmp.ne.s32.totalorder %s157, %s158
      %p170 = scmp.eq.s32.totalorder %s22, 1
      %p171 = por %p169, %p170
      %p173 = scmp.ne.s32.totalorder %s158, %s172
      %p174 = scmp.eq.s32.totalorder %s22, 0
      %p175 = por %p173, %p174
      %s176 = ssub.s32 %s16, %s23
      %p177 = scmp.eq.s32.totalorder %s176, 0
      %s179 = sadd.s32 %s178, 1
      %s180 = scalar_select %p177, %s178, %s179
      %p183 = pneg %p177
      %p184 = scmp.eq.s32.totalorder %s16, 1
      %p185 = por %p183, %p184
      %p186 = scmp.ne.s32.totalorder %s178, %s181
      %p187 = scmp.eq.s32.totalorder %s16, 0
      %p188 = por %p186, %p187
      %p189 = scmp.ne.s32.totalorder %s178, %s181
      %p190 = scmp.eq.s32.totalorder %s21, 1
      %p191 = por %p189, %p190
      %p192 = scmp.ne.s32.totalorder %s181, %s182
      %p193 = scmp.eq.s32.totalorder %s21, 0
      %p194 = por %p192, %p193
      %p195 = scmp.ne.s32.totalorder %s181, %s182
      %p196 = scmp.eq.s32.totalorder %s22, 1
      %p197 = por %p195, %p196
      %p199 = scmp.ne.s32.totalorder %s182, %s198
      %p200 = scmp.eq.s32.totalorder %s22, 0
      %p201 = por %p199, %p200
      %p202 = scmp.le.s32.totalorder 1, %s16
      %p203 = scmp.lt.s32.totalorder %s16, 3
      %p204 = pnand %p202, %p203
      %p205 = pneg %p204
      // Predicated region
      $region9: #{tpu_custom_call.1} parent=5 // pred_check
        _
      $region10: #{tpu_custom_call.1} parent=5 // pred_check_branch
        %207 = sbr.rel (%p204) target = $region12
      $region11: #{tpu_custom_call.1} parent=5 // pred_region
        %s208 = ssub.s32 %s16, 1
        // Predicated region
        $region13: #{tpu_custom_call.1} parent=11 // pred_check
          %p209 = pneg %p63
        $region14: #{tpu_custom_call.1} parent=11 // pred_check_branch
          %211 = sbr.rel (%p209) target = $region16
        $region15: #{tpu_custom_call.1} parent=11 // pred_region
          _
        $region16: #{tpu_custom_call.1} parent=11 // pred_fallthru
          _
        // Predicated region
        $region17: #{tpu_custom_call.1} parent=11 // pred_check
          %p212 = pneg %p84
        $region18: #{tpu_custom_call.1} parent=11 // pred_check_branch
          %214 = sbr.rel (%p212) target = $region20
        $region19: #{tpu_custom_call.1} parent=11 // pred_region
          _
        $region20: #{tpu_custom_call.1} parent=11 // pred_fallthru
          _
        // Predicated region
        $region21: #{tpu_custom_call.1} parent=11 // pred_check
          %p215 = pneg %p105
        $region22: #{tpu_custom_call.1} parent=11 // pred_check_branch
          %217 = sbr.rel (%p215) target = $region24
        $region23: #{tpu_custom_call.1} parent=11 // pred_region
          _
        $region24: #{tpu_custom_call.1} parent=11 // pred_fallthru
          _
        // Predicated region
        $region25: #{tpu_custom_call.1} parent=11 // pred_check
          %p218 = pneg %p126
        $region26: #{tpu_custom_call.1} parent=11 // pred_check_branch
          %220 = sbr.rel (%p218) target = $region28
        $region27: #{tpu_custom_call.1} parent=11 // pred_region
          _
        $region28: #{tpu_custom_call.1} parent=11 // pred_fallthru
          _
        // Predicated region
        $region29: #{tpu_custom_call.1} parent=11 // pred_check
          %p221 = pneg %p147
        $region30: #{tpu_custom_call.1} parent=11 // pred_check_branch
          %223 = sbr.rel (%p221) target = $region32
        $region31: #{tpu_custom_call.1} parent=11 // pred_region
          _
        $region32: #{tpu_custom_call.1} parent=11 // pred_fallthru
          _
        // Predicated region
        $region33: #{tpu_custom_call.1} parent=11 // pred_check
          %p224 = pneg %p168
        $region34: #{tpu_custom_call.1} parent=11 // pred_check_branch
          %226 = sbr.rel (%p224) target = $region36
        $region35: #{tpu_custom_call.1} parent=11 // pred_region
          _
        $region36: #{tpu_custom_call.1} parent=11 // pred_fallthru
          _
      $region12: #{tpu_custom_call.1} parent=5 // pred_fallthru
        _
      %p227 = scmp.lt.s32.totalorder %s16, 2
      // Predicated region
      $region37: #{tpu_custom_call.1} parent=5 // pred_check
        %p228 = pneg %p227
      $region38: #{tpu_custom_call.1} parent=5 // pred_check_branch
        %230 = sbr.rel (%p228) target = $region40
      $region39: #{tpu_custom_call.1} parent=5 // pred_region
        // Predicated region
        $region41: #{tpu_custom_call.1} parent=39 // pred_check
          %p231 = pneg %p36
        $region42: #{tpu_custom_call.1} parent=39 // pred_check_branch
          %233 = sbr.rel (%p231) target = $region44
        $region43: #{tpu_custom_call.1} parent=39 // pred_region
          %p234 = scmp.lt.s32.totalorder %s16, 1
          %s235 = scalar_select %p234, %s16, 1
          %s236 = smul.addr %s235, 8
          %s237 = scalar_lea.vmem %s0, %s236
        $region44: #{tpu_custom_call.1} parent=39 // pred_fallthru
          _
      $region40: #{tpu_custom_call.1} parent=5 // pred_fallthru
        _
      %p238 = scmp.le.s32.totalorder 1, %s16
      %p239 = scmp.lt.s32.totalorder %s16, 3
      %p240 = pnand %p238, %p239
      %p241 = pneg %p240
      // Predicated region
      $region45: #{tpu_custom_call.1} parent=5 // pred_check
        _
      $region46: #{tpu_custom_call.1} parent=5 // pred_check_branch
        %243 = sbr.rel (%p240) target = $region48
      $region47: #{tpu_custom_call.1} parent=5 // pred_region
        %s244 = ssub.s32 %s16, 1
        %p245 = scmp.lt.s32.totalorder %s21, 1
        %s246 = scalar_select %p245, %s21, 1
        %s247 = smul.addr %s246, 8
        %s248 = scalar_lea.vmem %s0, %s247
        %p249 = pneg %p42
        %p250 = pneg %p39
        %p251 = pneg %p63
        %p252 = pneg %p60
        %p253 = pneg %p84
        %p254 = pneg %p81
        %p255 = pneg %p105
        %p256 = pneg %p102
        %p257 = pneg %p126
        %p258 = pneg %p123
        %p259 = pneg %p147
        %p260 = pneg %p144
        %p261 = pneg %p168
        %p262 = pneg %p165
        %p263 = pneg %p194
        %p264 = pneg %p191
        %s265 = sand.u32 %s181, 1
        %s266 = scalar_lea.sflag [#allocation3], %s265
        %s267 = sand.u32 %s181, 1
        %s268 = smul.addr %s267, 8
        %s269 = scalar_lea.vmem [#allocation2], %s268
        %p270 = scmp.lt.s32.totalorder %s21, 1
        %s271 = scalar_select %p270, %s21, 1
        %s272 = smul.addr %s271, 8
        %s273 = scalar_lea.vmem %s0, %s272
        %v275 = vld [vmem:[%s273] sm:$0xff]
        %v276 = vpack.c.bf16 %v275, %v275
        %v277 = vld [vmem:[%s1] sm:$0xf]
        %v278 = vld [vmem:[%s1 + $0x4] sm:$0xf]
        %v279 = vld [vmem:[%s1 + $0x8] sm:$0xf]
        %v280 = vld [vmem:[%s1 + $0xc] sm:$0x1]
        %v281 = vld [vmem:[%s2] sm:$0x1]
        %v283 = vlaneseq
        %v284 = vshrl.u32 %v283, 7
        %v285 = vsub.s32 0, %v284
        %v286 = vrot.slane %v281, %v285
        %v292 = vunpack.c.l.b16 %v277
        %v293 = vunpack.c.l.b16 %v278
        %v294 = vunpack.c.l.b16 %v279
        %v295 = vunpack.c.l.b16 %v280
        %v296 = vpack.c.b16 %v293, %v292
        %v297 = vpack.c.b16 %v295, %v294
        %vm299 = vcmask 211968
        %v301 = vsel %vm299, %v276, 0
        %vm303 = vcmask 1044480
        %v305 = vsel %vm303, %v297, 0
        %307 = vmatprep.subr.bf16.mxu0 0
        %308 = vmatpush1.bf16.msra.mxu0 %v296
        %309 = vmatprep.subr.bf16.mxu0 0
        %310 = vmatpush1.bf16.msra.mxu0 %v305
        %311 = vmatprep.subr.bf16.mxu0 0
        %312 = vmatpush1.bf16.msra.mxu0 0
        %313 = vmatprep.subr.bf16.mxu0 0
        %314 = vmatpush1.bf16.msra.mxu0 0
        %315 = vmatprep.subr.bf16.mxu0 0
        %316 = vmatpush1.bf16.msra.mxu0 0
        %317 = vmatprep.subr.bf16.mxu0 0
        %318 = vmatpush1.bf16.msra.mxu0 0
        %319 = vmatprep.subr.bf16.mxu0 0
        %320 = vmatpush1.bf16.msra.mxu0 0
        %321 = vmatprep.subr.bf16.mxu0 0
        %322 = vmatpush1.bf16.msra.mxu0 0
        %323 = vmatprep.subr.bf16.mxu0 0
        %324 = vmatpush1.bf16.msra.mxu0 0
        %325 = vmatprep.subr.bf16.mxu0 0
        %326 = vmatpush1.bf16.msra.mxu0 0
        %327 = vmatprep.subr.bf16.mxu0 0
        %328 = vmatpush1.bf16.msra.mxu0 0
        %329 = vmatprep.subr.bf16.mxu0 0
        %330 = vmatpush1.bf16.msra.mxu0 0
        %331 = vmatprep.subr.bf16.mxu0 0
        %332 = vmatpush1.bf16.msra.mxu0 0
        %333 = vmatprep.subr.bf16.mxu0 0
        %334 = vmatpush1.bf16.msra.mxu0 0
        %335 = vmatprep.subr.bf16.mxu0 0
        %336 = vmatpush1.bf16.msra.mxu0 0
        %337 = vmatprep.subr.bf16.mxu0 0
        %338 = vmatpush1.bf16.msra.mxu0 0
        %339 = vmatprep.mubr.bf16.mxu0 0
        %340 = vmatmul.mubr.bf16.gmra.mrb[0].mxu0 %v301
        %v341 = vpop.f32.mrb[0].mxu0
        %v342 = vadd.f32 %v286, %v341
        %v343 = vpop.f32.mrb[0].mxu0
        %v344 = vpop.f32.mrb[0].mxu0
        %v345 = vpop.f32.mrb[0].mxu0
        %346 = vdwg.mxu0
        %v347 = vmax.f32 %v342, 0.0
        %v348 = vpack.c.bf16 %v347, %v347
        %v349 = vld [vmem:[%s3] sm:$0xf]
        %v350 = vld [vmem:[%s3 + $0x4] sm:$0xf]
        %v351 = vld [vmem:[%s3 + $0x8] sm:$0x1]
        %v352 = vld [vmem:[%s4] sm:$0x1]
        %v354 = vlaneseq
        %v355 = vshrl.u32 %v354, 7
        %v356 = vsub.s32 0, %v355
        %v357 = vrot.slane %v352, %v356
        %v362 = vunpack.c.l.b16 %v349
        %v363 = vunpack.c.l.b16 %v350
        %v364 = vunpack.c.l.b16 %v351
        %v365 = vpack.c.b16 %v363, %v362
        %v366 = vpack.c.b16 %v364, %v364
        %vm368 = vcmask 146432
        %v370 = vsel %vm368, %v348, 0
        %vm372 = vcmask 1040384
        %v374 = vsel %vm372, %v366, 0
        %376 = vmatprep.subr.bf16.mxu0 0
        %377 = vmatpush1.bf16.msra.mxu0 %v365
        %378 = vmatprep.subr.bf16.mxu0 0
        %379 = vmatpush1.bf16.msra.mxu0 %v374
        %380 = vmatprep.subr.bf16.mxu0 0
        %381 = vmatpush1.bf16.msra.mxu0 0
        %382 = vmatprep.subr.bf16.mxu0 0
        %383 = vmatpush1.bf16.msra.mxu0 0
        %384 = vmatprep.subr.bf16.mxu0 0
        %385 = vmatpush1.bf16.msra.mxu0 0
        %386 = vmatprep.subr.bf16.mxu0 0
        %387 = vmatpush1.bf16.msra.mxu0 0
        %388 = vmatprep.subr.bf16.mxu0 0
        %389 = vmatpush1.bf16.msra.mxu0 0
        %390 = vmatprep.subr.bf16.mxu0 0
        %391 = vmatpush1.bf16.msra.mxu0 0
        %392 = vmatprep.subr.bf16.mxu0 0
        %393 = vmatpush1.bf16.msra.mxu0 0
        %394 = vmatprep.subr.bf16.mxu0 0
        %395 = vmatpush1.bf16.msra.mxu0 0
        %396 = vmatprep.subr.bf16.mxu0 0
        %397 = vmatpush1.bf16.msra.mxu0 0
        %398 = vmatprep.subr.bf16.mxu0 0
        %399 = vmatpush1.bf16.msra.mxu0 0
        %400 = vmatprep.subr.bf16.mxu0 0
        %401 = vmatpush1.bf16.msra.mxu0 0
        %402 = vmatprep.subr.bf16.mxu0 0
        %403 = vmatpush1.bf16.msra.mxu0 0
        %404 = vmatprep.subr.bf16.mxu0 0
        %405 = vmatpush1.bf16.msra.mxu0 0
        %406 = vmatprep.subr.bf16.mxu0 0
        %407 = vmatpush1.bf16.msra.mxu0 0
        %408 = vmatprep.mubr.bf16.mxu0 0
        %409 = vmatmul.mubr.bf16.gmra.mrb[0].mxu0 %v370
        %v410 = vpop.f32.mrb[0].mxu0
        %v411 = vadd.f32 %v357, %v410
        %v412 = vpop.f32.mrb[0].mxu0
        %v413 = vpop.f32.mrb[0].mxu0
        %v414 = vpop.f32.mrb[0].mxu0
        %415 = vdwg.mxu0
        %v416 = vmax.f32 %v411, 0.0
        %v417 = vpack.c.bf16 %v416, %v416
        %v418 = vld [vmem:[%s5] sm:$0xf]
        %v419 = vld [vmem:[%s5 + $0x4] sm:$0xf]
        %v420 = vld [vmem:[%s5 + $0x8] sm:$0x1]
        %v421 = vld [vmem:[%s6] sm:$0x1]
        %v423 = vlaneseq
        %v424 = vshrl.u32 %v423, 7
        %v425 = vsub.s32 0, %v424
        %v426 = vrot.slane %v421, %v425
        %v431 = vunpack.c.l.b16 %v418
        %v432 = vunpack.c.l.b16 %v419
        %v433 = vunpack.c.l.b16 %v420
        %v434 = vpack.c.b16 %v432, %v431
        %v435 = vpack.c.b16 %v433, %v433
        %v438 = vsel %vm368, %v417, 0
        %v441 = vsel %vm372, %v435, 0
        %443 = vmatprep.subr.bf16.mxu0 0
        %444 = vmatpush1.bf16.msra.mxu0 %v434
        %445 = vmatprep.subr.bf16.mxu0 0
        %446 = vmatpush1.bf16.msra.mxu0 %v441
        %447 = vmatprep.subr.bf16.mxu0 0
        %448 = vmatpush1.bf16.msra.mxu0 0
        %449 = vmatprep.subr.bf16.mxu0 0
        %450 = vmatpush1.bf16.msra.mxu0 0
        %451 = vmatprep.subr.bf16.mxu0 0
        %452 = vmatpush1.bf16.msra.mxu0 0
        %453 = vmatprep.subr.bf16.mxu0 0
        %454 = vmatpush1.bf16.msra.mxu0 0
        %455 = vmatprep.subr.bf16.mxu0 0
        %456 = vmatpush1.bf16.msra.mxu0 0
        %457 = vmatprep.subr.bf16.mxu0 0
        %458 = vmatpush1.bf16.msra.mxu0 0
        %459 = vmatprep.subr.bf16.mxu0 0
        %460 = vmatpush1.bf16.msra.mxu0 0
        %461 = vmatprep.subr.bf16.mxu0 0
        %462 = vmatpush1.bf16.msra.mxu0 0
        %463 = vmatprep.subr.bf16.mxu0 0
        %464 = vmatpush1.bf16.msra.mxu0 0
        %465 = vmatprep.subr.bf16.mxu0 0
        %466 = vmatpush1.bf16.msra.mxu0 0
        %467 = vmatprep.subr.bf16.mxu0 0
        %468 = vmatpush1.bf16.msra.mxu0 0
        %469 = vmatprep.subr.bf16.mxu0 0
        %470 = vmatpush1.bf16.msra.mxu0 0
        %471 = vmatprep.subr.bf16.mxu0 0
        %472 = vmatpush1.bf16.msra.mxu0 0
        %473 = vmatprep.subr.bf16.mxu0 0
        %474 = vmatpush1.bf16.msra.mxu0 0
        %475 = vmatprep.mubr.bf16.mxu0 0
        %476 = vmatmul.mubr.bf16.gmra.mrb[0].mxu0 %v438
        %v477 = vpop.f32.mrb[0].mxu0
        %v478 = vadd.f32 %v426, %v477
        %v479 = vpop.f32.mrb[0].mxu0
        %v480 = vpop.f32.mrb[0].mxu0
        %v481 = vpop.f32.mrb[0].mxu0
        %482 = vdwg.mxu0
        %483 = vst.msk [vmem:[%s269] sm:$0xff] %vm299, %v478
        %s484 = sand.u32 %s181, 1
        %s485 = scalar_lea.sflag [#allocation3], %s484
        %s486 = sand.u32 %s181, 1
        %s487 = smul.addr %s486, 8
        %s488 = scalar_lea.vmem [#allocation2], %s487
        // Predicated region
        $region49: #{tpu_custom_call.1} parent=47 // pred_check
          %p489 = pneg %p191
        $region50: #{tpu_custom_call.1} parent=47 // pred_check_branch
          %491 = sbr.rel (%p489) target = $region52
        $region51: #{tpu_custom_call.1} parent=47 // pred_region
          %s493 = ssub.s32 128, 128
          %494 = vsyncadd %s485, %s493
          %s495 = smul.addr %s21, 128
          %s496 = scalar_lea.hbm %s7, %s495
          %s498 = sshll.u32 %s488, 4
          %s499 = int_to_ptr.vmem [resolvable:$true] %s498
          %501 = dma.vmem_to_hbm [thread:$0]  %s499, 128, %s496, %s485
        $region52: #{tpu_custom_call.1} parent=47 // pred_fallthru
          _
      $region48: #{tpu_custom_call.1} parent=5 // pred_fallthru
        _
      %p502 = scmp.le.s32.totalorder 2, %s16
      // Predicated region
      $region53: #{tpu_custom_call.1} parent=5 // pred_check
        %p503 = pneg %p502
      $region54: #{tpu_custom_call.1} parent=5 // pred_check_branch
        %505 = sbr.rel (%p503) target = $region56
      $region55: #{tpu_custom_call.1} parent=5 // pred_region
        %s506 = ssub.s32 %s16, 2
        // Predicated region
        $region57: #{tpu_custom_call.1} parent=55 // pred_check
          %p507 = pneg %p197
        $region58: #{tpu_custom_call.1} parent=55 // pred_check_branch
          %509 = sbr.rel (%p507) target = $region60
        $region59: #{tpu_custom_call.1} parent=55 // pred_region
          %s510 = sand.u32 %s182, 1
          %s511 = scalar_lea.sflag [#allocation3], %s510
          %s512 = sand.u32 %s182, 1
          %s513 = smul.addr %s512, 8
          %s514 = scalar_lea.vmem [#allocation2], %s513
          %515 = dma.done %s511, 128
        $region60: #{tpu_custom_call.1} parent=55 // pred_fallthru
          _
      $region56: #{tpu_custom_call.1} parent=5 // pred_fallthru
        _
    $region6: #{tpu_custom_call.1} parent=1 // loop_footer
      %s20 = sadd.s32 1, %s16
    $region7: #{tpu_custom_call.1} parent=1 // loop_footer_branch
      %15 = sbr.rel target = $region3
    $region8: #{tpu_custom_call.1} parent=1 // loop_exit
      _
    %516 = vsyncpa [#allocation3], 1
    %s517 = scalar_lea.sflag [#allocation3], 1
    %518 = vsyncpa %s517, 1

</llo_original>
